<compile_context>
chip_gen: v5e
topology: v5e:2x2
jax: 0.10.0
libtpu: 0.0.40
codegen_flags: <defaults>
</compile_context>

<pallas_src>
import jax
import jax.numpy as jnp
from jax import lax
from jax.experimental import pallas as pl
from jax.experimental.pallas import tpu as pltpu

# ---------------- config (small synthetic shapes) ----------------
N = 2                       # batch
OUT_C = 8                   # out_channels
IN_CHANNELS = (4, 8, 8)     # per-input channels (input 0 needs the 1x1 conv)
IN_SPATIAL = (16, 8, 32)    # same-size / upsample x2 / maxpool /2
TARGET = 16                 # target_size  (W*C = 16*8 = 128 -> full lane width)
NUM_INS = len(IN_CHANNELS)
EPS = 1e-4                  # weighted-merge eps
BN_EPS = 1e-5


# ---------------- fused Pallas kernel ----------------
def _make_fused_kernel(nb, h):
    """Kernel specialized on (batch, target_h) via closure; all other sizes are
    read from the refs themselves."""

    def fused_kernel(wm_ref, x0_ref, x1_ref, x2_ref, wbd_ref, b0_ref,
                     wbig_ref, scale_ref, shift_ref, o_ref, xp_ref):
        # x0_ref: (nb*h, W*Cin0)   x1_ref/x2_ref/o_ref: (nb*h, W*C) = (32, 128)
        # wbd: (W*Cin0, W*C)  b0/scale/shift: (1, W*C)  wbig: (3*W*C, W*C)
        # xp_ref (scratch): (nb, h+2, W*C)
        m, wc = x1_ref.shape

        # (a) 1x1 resample conv of input 0, fused as one lane-dense matmul
        #     against a block-diagonal weight (output already in W*C layout).
        y0 = jnp.dot(x0_ref[...], wbd_ref[...],
                     preferred_element_type=jnp.float32) + b0_ref[...]

        # (b) weighted merge (accumulator starts at w0*y0) + swish.
        acc = (wm_ref[0] * y0
               + wm_ref[1] * x1_ref[...]
               + wm_ref[2] * x2_ref[...])
        x = acc * (1.0 / (1.0 + jnp.exp(-acc)))        # swish = x * sigmoid(x)

        # (c) zero-pad rows (pad=1 along H) in a VMEM scratch; the column (W)
        #     padding is folded into the banded conv weight, so lanes stay
        #     dense and no HBM-side jnp.pad is needed.
        xp_ref[:, 0:1, :] = jnp.zeros((nb, 1, wc), jnp.float32)
        xp_ref[:, h + 1:h + 2, :] = jnp.zeros((nb, 1, wc), jnp.float32)
        xp_ref[:, 1:h + 1, :] = x.reshape(nb, h, wc)

        # (d) depthwise3x3 + pointwise1x1 as ONE im2col matmul:
        #     taps (m, 3*W*C) @ wbig (3*W*C, W*C) -> (m, W*C), K = 384.
        taps = jnp.concatenate(
            [xp_ref[:, kh:kh + h, :].reshape(m, wc) for kh in range(3)],
            axis=-1)
        y = jnp.dot(taps, wbig_ref[...], preferred_element_type=jnp.float32)

        # (e) folded pointwise bias + eval-mode BN; lane-dense unmasked store.
        o_ref[...] = y * scale_ref[...] + shift_ref[...]

    return fused_kernel


# ---------------- glue (data movement only) ----------------
def resize_nhwc(x, ts):
    """Resample._resize: nearest upsample if smaller, (k+1,stride k,pad 1)
    max-pool if larger."""
    _, H, W, _ = x.shape
    if (H, W) == (ts, ts):
        return x
    if H < ts:
        f = ts // H
        return jnp.repeat(jnp.repeat(x, f, axis=1), f, axis=2)
    k = W // ts
    return lax.reduce_window(
        x, -jnp.inf, lax.max,
        window_dimensions=(1, k + 1, k + 1, 1),
        window_strides=(1, k, k, 1),
        padding=((0, 0), (1, 1), (1, 1), (0, 0)))


# ---------------- forward (wrapper = layout plumbing only) ----------------
def weighted_merge_forward(inputs, params):
    assert len(inputs) == NUM_INS
    nb = inputs[0].shape[0]
    h = w_sz = TARGET
    c = OUT_C
    wc = w_sz * c

    # normalized fusion weights: relu(w) / (sum + eps)  (tiny, plain JAX)
    wm = jax.nn.relu(params["merge_weight"])
    wm = (wm / (jnp.sum(wm) + EPS)).astype(jnp.float32)

    # ---- input 0: needs the 1x1 projection; it is already at target size so
    # the projection is fused in-kernel via a block-diagonal weight. ----
    # TODO(synk): if an input needed BOTH the 1x1 projection and a resize, the
    # fusion would not apply (module applies conv before resize) — fall back.
    cin0 = IN_CHANNELS[0]
    assert inputs[0].shape[1:3] == (h, w_sz)
    x0f = inputs[0].reshape(nb * h, w_sz * cin0).astype(jnp.float32)
    wbd = jnp.einsum("pw,cd->pcwd", jnp.eye(w_sz, dtype=jnp.float32),
                     params["resample0_w"]).reshape(w_sz * cin0, wc)
    b0t = jnp.tile(params["resample0_b"], w_sz).reshape(1, wc)

    # ---- inputs 1 / 2: channels already match; resize then flatten lane-dense
    x1f = resize_nhwc(inputs[1], h).reshape(nb * h, wc).astype(jnp.float32)
    x2f = resize_nhwc(inputs[2], h).reshape(nb * h, wc).astype(jnp.float32)

    # ---- depthwise 3x3 * pointwise 1x1 collapsed into ONE banded weight:
    # wbig[kh*W*C + p*C + cc, w*C + d] = dw[kh, p-w+1, cc] * pw[cc, d]
    # (column zero-padding is encoded by the band structure)
    kw_idx = jnp.arange(3)[:, None, None]
    p_idx = jnp.arange(w_sz)[None, :, None]
    w_idx = jnp.arange(w_sz)[None, None, :]
    sel = (p_idx == w_idx + kw_idx - 1).astype(jnp.float32)        # (3, W, W)
    wbig = jnp.einsum("kpw,hkc,cd->hpcwd", sel, params["dw_w"],
                      params["pw_w"]).reshape(3 * wc, wc)

    # ---- fold pointwise bias + eval-mode BN into per-channel scale / shift
    scale = params["bn_gamma"] / jnp.sqrt(params["bn_var"] + BN_EPS)
    shift = params["bn_beta"] + (params["pw_b"] - params["bn_mean"]) * scale
    scale_t = jnp.tile(scale, w_sz).reshape(1, wc)
    shift_t = jnp.tile(shift, w_sz).reshape(1, wc)

    out2d = pl.pallas_call(
        _make_fused_kernel(nb, h),
        out_shape=jax.ShapeDtypeStruct((nb * h, wc), jnp.float32),
        in_specs=[pl.BlockSpec(memory_space=pltpu.MemorySpace.SMEM)]
        + [pl.BlockSpec(memory_space=pltpu.MemorySpace.VMEM)] * 8,
        out_specs=pl.BlockSpec(memory_space=pltpu.MemorySpace.VMEM),
        scratch_shapes=[pltpu.VMEM((nb, h + 2, wc), jnp.float32)],
    )(wm, x0f, x1f, x2f, wbd, b0t, wbig, scale_t, shift_t)

    return out2d.reshape(nb, h, w_sz, c)


# ---------------- pure-JAX reference (independent implementation) ----------
def reference_resize(x, ts):
    nb, H, W, c = x.shape
    if (H, W) == (ts, ts):
        return x
    if H < ts:
        idx = jnp.arange(ts) // (ts // H)
        return x[:, idx][:, :, idx]
    k = W // ts
    xp = jnp.pad(x, ((0, 0), (1, 1), (1, 1), (0, 0)),
                 constant_values=-jnp.inf)
    out = jnp.full((nb, ts, ts, c), -jnp.inf, x.dtype)
    for dh in range(k + 1):
        for dw in range(k + 1):
            out = jnp.maximum(out, xp[:, dh:dh + k * ts:k, dw:dw + k * ts:k, :])
    return out


def reference_forward(inputs, params):
    w = jax.nn.relu(params["merge_weight"])
    w = w / (jnp.sum(w) + EPS)
    acc = 0.0
    for i, x in enumerate(inputs):
        if IN_CHANNELS[i] != OUT_C:
            x = jnp.einsum("nhwc,cd->nhwd", x, params[f"resample{i}_w"]) \
                + params[f"resample{i}_b"]
        acc = acc + w[i] * reference_resize(x, TARGET)
    x = acc * jax.nn.sigmoid(acc)
    xp = jnp.pad(x, ((0, 0), (1, 1), (1, 1), (0, 0)))
    dw = jnp.zeros_like(x)
    for kh in range(3):
        for kw in range(3):
            dw = dw + xp[:, kh:kh + TARGET, kw:kw + TARGET, :] * params["dw_w"][kh, kw, :]
    y = jnp.einsum("nhwc,cd->nhwd", dw, params["pw_w"]) + params["pw_b"]
    y = params["bn_gamma"] * (y - params["bn_mean"]) / jnp.sqrt(params["bn_var"] + BN_EPS) \
        + params["bn_beta"]
    return y


# ---------------- deterministic parameter init ----------------
def init_params(key):
    ks = jax.random.split(key, 6)
    p = {"merge_weight": jnp.ones((NUM_INS,), jnp.float32)}  # Parameter.fill_(1)
    k = 0
    for i, c in enumerate(IN_CHANNELS):
        if c != OUT_C:
            p[f"resample{i}_w"] = 0.1 * jax.random.normal(ks[k], (c, OUT_C), jnp.float32); k += 1
            p[f"resample{i}_b"] = 0.05 * jax.random.normal(ks[k], (OUT_C,), jnp.float32); k += 1
    p["dw_w"] = 0.1 * jax.random.normal(ks[k], (3, 3, OUT_C), jnp.float32); k += 1
    p["pw_w"] = 0.1 * jax.random.normal(ks[k], (OUT_C, OUT_C), jnp.float32); k += 1
    p["pw_b"] = 0.05 * jax.random.normal(ks[k], (OUT_C,), jnp.float32); k += 1
    # eval-mode BatchNorm of the SeparableConv2d (deterministic synthetic stats)
    p["bn_gamma"] = jnp.linspace(0.9, 1.1, OUT_C, dtype=jnp.float32)
    p["bn_beta"] = jnp.linspace(-0.1, 0.1, OUT_C, dtype=jnp.float32)
    p["bn_mean"] = jnp.linspace(-0.05, 0.05, OUT_C, dtype=jnp.float32)
    p["bn_var"] = jnp.linspace(0.8, 1.2, OUT_C, dtype=jnp.float32)
    return p


if __name__ == "__main__":
    key = jax.random.PRNGKey(0)
    pk, ik = jax.random.split(key)
    params = init_params(pk)
    in_keys = jax.random.split(ik, NUM_INS)
    inputs = [
        jax.random.normal(in_keys[i],
                          (N, IN_SPATIAL[i], IN_SPATIAL[i], IN_CHANNELS[i]),
                          jnp.float32)
        for i in range(NUM_INS)
    ]

    out = weighted_merge_forward(inputs, params)
    out = jax.block_until_ready(out)
    assert out.shape == (N, TARGET, TARGET, OUT_C), out.shape

    ref = reference_forward(inputs, params)
    max_err = float(jnp.max(jnp.abs(out - ref)))
    assert jnp.allclose(out, ref, atol=2e-3, rtol=2e-3), max_err

    print("KERNEL_OK")
</pallas_src>

<mosaic_0001>
module attributes {stable_mosaic.version = 11 : i64} {
  func.func @fused_kernel(%arg0: memref<3xf32, #tpu.memory_space<smem>>, %arg1: memref<32x64xf32, #tpu.memory_space<vmem>>, %arg2: memref<32x128xf32, #tpu.memory_space<vmem>>, %arg3: memref<32x128xf32, #tpu.memory_space<vmem>>, %arg4: memref<64x128xf32, #tpu.memory_space<vmem>>, %arg5: memref<1x128xf32, #tpu.memory_space<vmem>>, %arg6: memref<384x128xf32, #tpu.memory_space<vmem>>, %arg7: memref<1x128xf32, #tpu.memory_space<vmem>>, %arg8: memref<1x128xf32, #tpu.memory_space<vmem>>, %arg9: memref<32x128xf32, #tpu.memory_space<vmem>>, %arg10: memref<2x18x128xf32, #tpu.memory_space<vmem>>) attributes {dimension_semantics = [], scalar_prefetch = 0 : i64, scratch_operands = 1 : i64, tpu.core_type = #tpu.core_type<tc>} {
    %c0 = arith.constant 0 : index
    %c0_0 = arith.constant 0 : index
    %0 = vector.load %arg1[%c0, %c0_0] : memref<32x64xf32, #tpu.memory_space<vmem>>, vector<32x64xf32>
    %c0_1 = arith.constant 0 : index
    %c0_2 = arith.constant 0 : index
    %1 = vector.load %arg4[%c0_1, %c0_2] : memref<64x128xf32, #tpu.memory_space<vmem>>, vector<64x128xf32>
    %cst = arith.constant dense<0.000000e+00> : vector<32x128xf32>
    %2 = tpu.matmul %0, %1, %cst {dimension_numbers = #tpu.dot_dimension_numbers<[1], [0], [0], [1], [0, 0, 1, 1], [], []>} : vector<32x64xf32>, vector<64x128xf32>, vector<32x128xf32> -> vector<32x128xf32>
    %c0_3 = arith.constant 0 : index
    %c0_4 = arith.constant 0 : index
    %3 = vector.load %arg5[%c0_3, %c0_4] : memref<1x128xf32, #tpu.memory_space<vmem>>, vector<1x128xf32>
    %4 = vector.broadcast %3 : vector<1x128xf32> to vector<32x128xf32>
    %5 = arith.addf %2, %4 : vector<32x128xf32>
    %c0_5 = arith.constant 0 : index
    %6 = memref.load %arg0[%c0_5] : memref<3xf32, #tpu.memory_space<smem>>
    %7 = vector.broadcast %6 : f32 to vector<32x128xf32>
    %8 = arith.mulf %7, %5 : vector<32x128xf32>
    %c1 = arith.constant 1 : index
    %9 = memref.load %arg0[%c1] : memref<3xf32, #tpu.memory_space<smem>>
    %c0_6 = arith.constant 0 : index
    %c0_7 = arith.constant 0 : index
    %10 = vector.load %arg2[%c0_6, %c0_7] : memref<32x128xf32, #tpu.memory_space<vmem>>, vector<32x128xf32>
    %11 = vector.broadcast %9 : f32 to vector<32x128xf32>
    %12 = arith.mulf %11, %10 : vector<32x128xf32>
    %13 = arith.addf %8, %12 : vector<32x128xf32>
    %c2 = arith.constant 2 : index
    %14 = memref.load %arg0[%c2] : memref<3xf32, #tpu.memory_space<smem>>
    %c0_8 = arith.constant 0 : index
    %c0_9 = arith.constant 0 : index
    %15 = vector.load %arg3[%c0_8, %c0_9] : memref<32x128xf32, #tpu.memory_space<vmem>>, vector<32x128xf32>
    %16 = vector.broadcast %14 : f32 to vector<32x128xf32>
    %17 = arith.mulf %16, %15 : vector<32x128xf32>
    %18 = arith.addf %13, %17 : vector<32x128xf32>
    %cst_10 = arith.constant 0.000000e+00 : f32
    %19 = vector.broadcast %cst_10 : f32 to vector<32x128xf32>
    %20 = arith.subf %19, %18 : vector<32x128xf32>
    %21 = math.exp %20 : vector<32x128xf32>
    %cst_11 = arith.constant 1.000000e+00 : f32
    %22 = vector.broadcast %cst_11 : f32 to vector<32x128xf32>
    %23 = arith.addf %22, %21 : vector<32x128xf32>
    %cst_12 = arith.constant 1.000000e+00 : f32
    %24 = vector.broadcast %cst_12 : f32 to vector<32x128xf32>
    %25 = arith.divf %24, %23 : vector<32x128xf32>
    %26 = arith.mulf %18, %25 : vector<32x128xf32>
    %cst_13 = arith.constant 0.000000e+00 : f32
    %27 = vector.broadcast %cst_13 : f32 to vector<2x1x128xf32>
    %c0_14 = arith.constant 0 : index
    %c0_15 = arith.constant 0 : index
    %c0_16 = arith.constant 0 : index
    %28 = vector.load %arg10[%c0_14, %c0_15, %c0_16] : memref<2x18x128xf32, #tpu.memory_space<vmem>>, vector<2x1x128xf32>
    tpu.vector_store %arg10[%c0_14, %c0_15, %c0_16], %27 {strides = array<i32>} : memref<2x18x128xf32, #tpu.memory_space<vmem>>, vector<2x1x128xf32>,
    %cst_17 = arith.constant 0.000000e+00 : f32
    %29 = vector.broadcast %cst_17 : f32 to vector<2x1x128xf32>
    %c0_18 = arith.constant 0 : index
    %c17 = arith.constant 17 : index
    %c0_19 = arith.constant 0 : index
    %30 = vector.load %arg10[%c0_18, %c17, %c0_19] : memref<2x18x128xf32, #tpu.memory_space<vmem>>, vector<2x1x128xf32>
    tpu.vector_store %arg10[%c0_18, %c17, %c0_19], %29 {strides = array<i32>} : memref<2x18x128xf32, #tpu.memory_space<vmem>>, vector<2x1x128xf32>,
    %31 = vector.shape_cast %26 : vector<32x128xf32> to vector<2x16x128xf32>
    %c0_20 = arith.constant 0 : index
    %c1_21 = arith.constant 1 : index
    %c0_22 = arith.constant 0 : index
    %32 = vector.load %arg10[%c0_20, %c1_21, %c0_22] : memref<2x18x128xf32, #tpu.memory_space<vmem>>, vector<2x16x128xf32>
    tpu.vector_store %arg10[%c0_20, %c1_21, %c0_22], %31 {strides = array<i32>} : memref<2x18x128xf32, #tpu.memory_space<vmem>>, vector<2x16x128xf32>,
    %c0_23 = arith.constant 0 : index
    %c0_24 = arith.constant 0 : index
    %c0_25 = arith.constant 0 : index
    %33 = vector.load %arg10[%c0_23, %c0_24, %c0_25] : memref<2x18x128xf32, #tpu.memory_space<vmem>>, vector<2x16x128xf32>
    %34 = vector.shape_cast %33 : vector<2x16x128xf32> to vector<32x128xf32>
    %c0_26 = arith.constant 0 : index
    %c1_27 = arith.constant 1 : index
    %c0_28 = arith.constant 0 : index
    %35 = vector.load %arg10[%c0_26, %c1_27, %c0_28] : memref<2x18x128xf32, #tpu.memory_space<vmem>>, vector<2x16x128xf32>
    %36 = vector.shape_cast %35 : vector<2x16x128xf32> to vector<32x128xf32>
    %c0_29 = arith.constant 0 : index
    %c2_30 = arith.constant 2 : index
    %c0_31 = arith.constant 0 : index
    %37 = vector.load %arg10[%c0_29, %c2_30, %c0_31] : memref<2x18x128xf32, #tpu.memory_space<vmem>>, vector<2x16x128xf32>
    %38 = vector.shape_cast %37 : vector<2x16x128xf32> to vector<32x128xf32>
    %39 = tpu.concatenate %34, %36, %38 in 1 : vector<32x128xf32>, vector<32x128xf32>, vector<32x128xf32> -> vector<32x384xf32>
    %c0_32 = arith.constant 0 : index
    %c0_33 = arith.constant 0 : index
    %40 = vector.load %arg6[%c0_32, %c0_33] : memref<384x128xf32, #tpu.memory_space<vmem>>, vector<384x128xf32>
    %cst_34 = arith.constant dense<0.000000e+00> : vector<32x128xf32>
    %41 = tpu.matmul %39, %40, %cst_34 {dimension_numbers = #tpu.dot_dimension_numbers<[1], [0], [0], [1], [0, 0, 1, 1], [], []>} : vector<32x384xf32>, vector<384x128xf32>, vector<32x128xf32> -> vector<32x128xf32>
    %c0_35 = arith.constant 0 : index
    %c0_36 = arith.constant 0 : index
    %42 = vector.load %arg7[%c0_35, %c0_36] : memref<1x128xf32, #tpu.memory_space<vmem>>, vector<1x128xf32>
    %43 = vector.broadcast %42 : vector<1x128xf32> to vector<32x128xf32>
    %44 = arith.mulf %41, %43 : vector<32x128xf32>
    %c0_37 = arith.constant 0 : index
    %c0_38 = arith.constant 0 : index
    %45 = vector.load %arg8[%c0_37, %c0_38] : memref<1x128xf32, #tpu.memory_space<vmem>>, vector<1x128xf32>
    %46 = vector.broadcast %45 : vector<1x128xf32> to vector<32x128xf32>
    %47 = arith.addf %44, %46 : vector<32x128xf32>
    %c0_39 = arith.constant 0 : index
    %c0_40 = arith.constant 0 : index
    %48 = vector.load %arg9[%c0_39, %c0_40] : memref<32x128xf32, #tpu.memory_space<vmem>>, vector<32x128xf32>
    tpu.vector_store %arg9[%c0_39, %c0_40], %47 {strides = array<i32>} : memref<32x128xf32, #tpu.memory_space<vmem>>, vector<32x128xf32>,
    return
  }
}

</mosaic_0001>

<llo_original>
// kernel: tpu_custom_call.1
$region0: #{tpu_custom_call.1}
  #allocation0 [shape = 'u32[]', space=smem, size = 0x4, offset = 0x4, fixed_abs, tag = 'smem constant byte address 0x4 - core index']
  #allocation1 [shape = 'u32[72,128]{1,0:T(1,128)}', space=vmem, size = 0x9000, scoped, tag = 'internal scratch']
  #allocation2 [shape = 'f32[2,18,128]{2,1,0:T(8,128)}', space=vmem, size = 0x6000, scoped, tag = 'scratch operand']
  %s0 = inlined_call_operand.hbm [shape: f32[3], index: 0, kind: input, shape index: {}]
  %s1 = inlined_call_operand.hbm [shape: f32[32,64], index: 1, kind: input, shape index: {}]
  %s2 = inlined_call_operand.hbm [shape: f32[32,128], index: 2, kind: input, shape index: {}]
  %s3 = inlined_call_operand.hbm [shape: f32[32,128], index: 3, kind: input, shape index: {}]
  %s4 = inlined_call_operand.hbm [shape: f32[64,128], index: 4, kind: input, shape index: {}]
  %s5 = inlined_call_operand.vmem [shape: f32[1,128], index: 5, kind: input, shape index: {}]
  %s6 = inlined_call_operand.hbm [shape: f32[384,128], index: 6, kind: input, shape index: {}]
  %s7 = inlined_call_operand.vmem [shape: f32[1,128], index: 7, kind: input, shape index: {}]
  %s8 = inlined_call_operand.vmem [shape: f32[1,128], index: 8, kind: input, shape index: {}]
  %s9 = inlined_call_operand.hbm [shape: f32[32,128], index: 9, kind: output, shape index: {}]
  %s10 = sld [smem:[#allocation0]]
  $region70: #{tpu_custom_call.1} parent=0
    _
  %s12 = ssub.s32 1, %s10
  %s13 = scalar_select 0, %s12, %s10
  $region1: #{tpu_custom_call.1} parent=0
    #allocation3 [shape = 'u8[512]{0}', space=smem, size = 0x200, scoped, tag = 'input window, operand 0, single buffered']
    #allocation4 [shape = 's32[1]{0}', space=sflag, size = 0x4, scoped, tag = 'scoped memory for tpu_custom_call.1']
    #allocation5 [shape = 's32[1]{0}', space=sflag, size = 0x4, scoped, tag = 'scoped memory for tpu_custom_call.1']
    #allocation6 [shape = 's32[1]{0}', space=sflag, size = 0x4, scoped, tag = 'scoped memory for tpu_custom_call.1']
    #allocation7 [shape = 'u8[16384]{0}', space=vmem, size = 0x4000, scoped, tag = 'input window, operand 1, single buffered']
    #allocation8 [shape = 'u8[16384]{0}', space=vmem, size = 0x4000, scoped, tag = 'input window, operand 2, single buffered']
    #allocation9 [shape = 's32[1]{0}', space=sflag, size = 0x4, scoped, tag = 'scoped memory for tpu_custom_call.1']
    #allocation10 [shape = 'u8[16384]{0}', space=vmem, size = 0x4000, scoped, tag = 'input window, operand 3, single buffered']
    #allocation11 [shape = 'u8[32768]{0}', space=vmem, size = 0x8000, scoped, tag = 'input window, operand 4, single buffered']
    #allocation12 [shape = 's32[1]{0}', space=sflag, size = 0x4, scoped, tag = 'scoped memory for tpu_custom_call.1']
    #allocation13 [shape = 'u8[196608]{0}', space=vmem, size = 0x30000, scoped, tag = 'input window, operand 6, single buffered']
    #allocation14 [shape = 'u8[16384]{0}', space=vmem, size = 0x4000, scoped, tag = 'output window, operand 0, single buffered']
    %14 = vsyncpa [#allocation6], 0
    %15 = vsyncpa [#allocation4], 0
    %16 = vsyncpa [#allocation9], 0
    %17 = vsyncpa [#allocation12], 0
    %18 = vsyncpa [#allocation5], 0
    // Predicated region
    $region2: #{tpu_custom_call.1} parent=1 // pred_check
      _
    $region3: #{tpu_custom_call.1} parent=1 // pred_check_branch
      %20 = sbr.rel (0) target = $region5
    $region4: #{tpu_custom_call.1} parent=1 // pred_region
      %22 = vsyncadd [#allocation6], 0
      %s24 = sshll.u32 %s0, 4
      %s25 = int_to_ptr.hbm [resolvable:$true] %s24
      %27 = dma.hbm_to_smem %s25, 16, [#allocation3], [#allocation6]
    $region5: #{tpu_custom_call.1} parent=1 // pred_fallthru
      _
    // Predicated region
    $region6: #{tpu_custom_call.1} parent=1 // pred_check
      _
    $region7: #{tpu_custom_call.1} parent=1 // pred_check_branch
      %29 = sbr.rel (0) target = $region9
    $region8: #{tpu_custom_call.1} parent=1 // pred_region
      %31 = vsyncadd [#allocation4], 0
      %s32 = sshll.u32 %s1, 4
      %s33 = int_to_ptr.hbm [resolvable:$true] %s32
      %s34 = sshll.u32 [#allocation7], 4
      %s35 = int_to_ptr.vmem [resolvable:$true] %s34
      %40 = dma.hbm_to_vmem [thread:$0]  %s33, 512, %s35, [#allocation4], 128, 128, 8
    $region9: #{tpu_custom_call.1} parent=1 // pred_fallthru
      _
    // Predicated region
    $region10: #{tpu_custom_call.1} parent=1 // pred_check
      _
    $region11: #{tpu_custom_call.1} parent=1 // pred_check_branch
      %42 = sbr.rel (0) target = $region13
    $region12: #{tpu_custom_call.1} parent=1 // pred_region
      %44 = vsyncadd [#allocation9], 0
      %s45 = sshll.u32 %s2, 4
      %s46 = int_to_ptr.hbm [resolvable:$true] %s45
      %s47 = sshll.u32 [#allocation8], 4
      %s48 = int_to_ptr.vmem [resolvable:$true] %s47
      %53 = dma.hbm_to_vmem [thread:$0]  %s46, 512, %s48, [#allocation9], 128, 128, 8
    $region13: #{tpu_custom_call.1} parent=1 // pred_fallthru
      _
    // Predicated region
    $region14: #{tpu_custom_call.1} parent=1 // pred_check
      _
    $region15: #{tpu_custom_call.1} parent=1 // pred_check_branch
      %55 = sbr.rel (0) target = $region17
    $region16: #{tpu_custom_call.1} parent=1 // pred_region
      %57 = vsyncadd [#allocation9], 0
      %s58 = sshll.u32 %s3, 4
      %s59 = int_to_ptr.hbm [resolvable:$true] %s58
      %s60 = sshll.u32 [#allocation10], 4
      %s61 = int_to_ptr.vmem [resolvable:$true] %s60
      %66 = dma.hbm_to_vmem [thread:$0]  %s59, 512, %s61, [#allocation9], 128, 128, 8
    $region17: #{tpu_custom_call.1} parent=1 // pred_fallthru
      _
    // Predicated region
    $region18: #{tpu_custom_call.1} parent=1 // pred_check
      _
    $region19: #{tpu_custom_call.1} parent=1 // pred_check_branch
      %68 = sbr.rel (0) target = $region21
    $region20: #{tpu_custom_call.1} parent=1 // pred_region
      %70 = vsyncadd [#allocation12], 0
      %s71 = sshll.u32 %s4, 4
      %s72 = int_to_ptr.hbm [resolvable:$true] %s71
      %s73 = sshll.u32 [#allocation11], 4
      %s74 = int_to_ptr.vmem [resolvable:$true] %s73
      %79 = dma.hbm_to_vmem [thread:$0]  %s72, 1024, %s74, [#allocation12], 128, 128, 8
    $region21: #{tpu_custom_call.1} parent=1 // pred_fallthru
      _
    // Predicated region
    $region22: #{tpu_custom_call.1} parent=1 // pred_check
      _
    $region23: #{tpu_custom_call.1} parent=1 // pred_check_branch
      %81 = sbr.rel (0) target = $region25
    $region24: #{tpu_custom_call.1} parent=1 // pred_region
      _
    $region25: #{tpu_custom_call.1} parent=1 // pred_fallthru
      _
    // Predicated region
    $region26: #{tpu_custom_call.1} parent=1 // pred_check
      _
    $region27: #{tpu_custom_call.1} parent=1 // pred_check_branch
      %83 = sbr.rel (0) target = $region29
    $region28: #{tpu_custom_call.1} parent=1 // pred_region
      %85 = vsyncadd [#allocation12], 0
      %s86 = sshll.u32 %s6, 4
      %s87 = int_to_ptr.hbm [resolvable:$true] %s86
      %s88 = sshll.u32 [#allocation13], 4
      %s89 = int_to_ptr.vmem [resolvable:$true] %s88
      %94 = dma.hbm_to_vmem [thread:$0]  %s87, 6144, %s89, [#allocation12], 128, 128, 8
    $region29: #{tpu_custom_call.1} parent=1 // pred_fallthru
      _
    // Predicated region
    $region30: #{tpu_custom_call.1} parent=1 // pred_check
      _
    $region31: #{tpu_custom_call.1} parent=1 // pred_check_branch
      %96 = sbr.rel (0) target = $region33
    $region32: #{tpu_custom_call.1} parent=1 // pred_region
      _
    $region33: #{tpu_custom_call.1} parent=1 // pred_fallthru
      _
    // Predicated region
    $region34: #{tpu_custom_call.1} parent=1 // pred_check
      _
    $region35: #{tpu_custom_call.1} parent=1 // pred_check_branch
      %98 = sbr.rel (0) target = $region37
    $region36: #{tpu_custom_call.1} parent=1 // pred_region
      _
    $region37: #{tpu_custom_call.1} parent=1 // pred_fallthru
      _
    // Predicated region
    $region38: #{tpu_custom_call.1} parent=1 // pred_check
      _
    $region39: #{tpu_custom_call.1} parent=1 // pred_check_branch
      %100 = sbr.rel (0) target = $region41
    $region40: #{tpu_custom_call.1} parent=1 // pred_region
      %102 = dma.done [#allocation6], 16
    $region41: #{tpu_custom_call.1} parent=1 // pred_fallthru
      _
    // Predicated region
    $region42: #{tpu_custom_call.1} parent=1 // pred_check
      _
    $region43: #{tpu_custom_call.1} parent=1 // pred_check_branch
      %104 = sbr.rel (0) target = $region45
    $region44: #{tpu_custom_call.1} parent=1 // pred_region
      %106 = dma.done [#allocation4], 512
    $region45: #{tpu_custom_call.1} parent=1 // pred_fallthru
      _
    // Predicated region
    $region46: #{tpu_custom_call.1} parent=1 // pred_check
      _
    $region47: #{tpu_custom_call.1} parent=1 // pred_check_branch
      %108 = sbr.rel (0) target = $region49
    $region48: #{tpu_custom_call.1} parent=1 // pred_region
      %110 = dma.done [#allocation9], 512
    $region49: #{tpu_custom_call.1} parent=1 // pred_fallthru
      _
    // Predicated region
    $region50: #{tpu_custom_call.1} parent=1 // pred_check
      _
    $region51: #{tpu_custom_call.1} parent=1 // pred_check_branch
      %112 = sbr.rel (0) target = $region53
    $region52: #{tpu_custom_call.1} parent=1 // pred_region
      %114 = dma.done [#allocation9], 512
    $region53: #{tpu_custom_call.1} parent=1 // pred_fallthru
      _
    // Predicated region
    $region54: #{tpu_custom_call.1} parent=1 // pred_check
      _
    $region55: #{tpu_custom_call.1} parent=1 // pred_check_branch
      %116 = sbr.rel (0) target = $region57
    $region56: #{tpu_custom_call.1} parent=1 // pred_region
      %118 = dma.done [#allocation12], 1024
    $region57: #{tpu_custom_call.1} parent=1 // pred_fallthru
      _
    // Predicated region
    $region58: #{tpu_custom_call.1} parent=1 // pred_check
      _
    $region59: #{tpu_custom_call.1} parent=1 // pred_check_branch
      %120 = sbr.rel (0) target = $region61
    $region60: #{tpu_custom_call.1} parent=1 // pred_region
      %122 = dma.done [#allocation12], 6144
    $region61: #{tpu_custom_call.1} parent=1 // pred_fallthru
      _
    %123 = sfence
    %v124 = vld [vmem:[#allocation7] sm:$0xff]
    %v125 = vld [vmem:[#allocation7 + $0x8] sm:$0xff]
    %v126 = vld [vmem:[#allocation7 + $0x10] sm:$0xff]
    %v127 = vld [vmem:[#allocation7 + $0x18] sm:$0xff]
    %v128 = vld [vmem:[#allocation11] sm:$0xff]
    %v129 = vld [vmem:[#allocation11 + $0x8] sm:$0xff]
    %v130 = vld [vmem:[#allocation11 + $0x10] sm:$0xff]
    %v131 = vld [vmem:[#allocation11 + $0x18] sm:$0xff]
    %v132 = vld [vmem:[#allocation11 + $0x20] sm:$0xff]
    %v133 = vld [vmem:[#allocation11 + $0x28] sm:$0xff]
    %v134 = vld [vmem:[#allocation11 + $0x30] sm:$0xff]
    %v135 = vld [vmem:[#allocation11 + $0x38] sm:$0xff]
    %v136 = vld [vmem:[%s5] sm:$0x1]
    %v138 = vperm.slane %v136, 0
    %vm140 = vcmask 523264
    %v142 = vsel %vm140, %v124, 0
    %v145 = vsel %vm140, %v125, 0
    %v148 = vsel %vm140, %v126, 0
    %v151 = vsel %vm140, %v127, 0
    %153 = vmatpush.msra.mxu0 0.0
    %154 = vmatpush.msra.mxu0 0.0
    %155 = vmatpush.msra.mxu0 0.0
    %156 = vmatpush.msra.mxu0 0.0
    %157 = vmatpush.msra.mxu0 0.0
    %158 = vmatpush.msra.mxu0 0.0
    %159 = vmatpush.msra.mxu0 0.0
    %160 = vmatpush.msra.mxu0 0.0
    %161 = vmatpush.msra.mxu0 %v135
    %162 = vmatpush.msra.mxu0 %v134
    %163 = vmatpush.msra.mxu0 %v133
    %164 = vmatpush.msra.mxu0 %v132
    %165 = vmatpush.msra.mxu0 %v131
    %166 = vmatpush.msra.mxu0 %v130
    %167 = vmatpush.msra.mxu0 %v129
    %168 = vmatpush.msra.mxu0 %v128
    %169 = vmatmul.f32.gmra.mxu0 %v142
    %v170 = vpop.f32.mrf.mxu0
    %v171 = vadd.f32 %v138, %v170
    %172 = vmatmul.f32.gmra.mxu0 %v145
    %v173 = vpop.f32.mrf.mxu0
    %v174 = vadd.f32 %v138, %v173
    %175 = vmatmul.f32.gmra.mxu0 %v148
    %v176 = vpop.f32.mrf.mxu0
    %v177 = vadd.f32 %v138, %v176
    %178 = vmatmul.f32.gmra.mxu0 %v151
    %v179 = vpop.f32.mrf.mxu0
    %v180 = vadd.f32 %v138, %v179
    %181 = vdwg.mxu0
    %s182 = sld [smem:[#allocation3]]
    %v183 = vstv %s182
    %v184 = vmul.f32 %v183, %v171
    %v185 = vmul.f32 %v183, %v174
    %v186 = vmul.f32 %v183, %v177
    %v187 = vmul.f32 %v183, %v180
    %s188 = sld [smem:[#allocation3 + $0x1]]
    %v189 = vld [vmem:[#allocation8] sm:$0xff]
    %v190 = vld [vmem:[#allocation8 + $0x8] sm:$0xff]
    %v191 = vld [vmem:[#allocation8 + $0x10] sm:$0xff]
    %v192 = vld [vmem:[#allocation8 + $0x18] sm:$0xff]
    %v193 = vstv %s188
    %v194 = vmul.f32 %v193, %v189
    %v195 = vmul.f32 %v193, %v190
    %v196 = vmul.f32 %v193, %v191
    %v197 = vmul.f32 %v193, %v192
    %v198 = vadd.f32 %v184, %v194
    %v199 = vadd.f32 %v185, %v195
    %v200 = vadd.f32 %v186, %v196
    %v201 = vadd.f32 %v187, %v197
    %s202 = sld [smem:[#allocation3 + $0x2]]
    %v203 = vld [vmem:[#allocation10] sm:$0xff]
    %v204 = vld [vmem:[#allocation10 + $0x8] sm:$0xff]
    %v205 = vld [vmem:[#allocation10 + $0x10] sm:$0xff]
    %v206 = vld [vmem:[#allocation10 + $0x18] sm:$0xff]
    %v207 = vstv %s202
    %v208 = vmul.f32 %v207, %v203
    %v209 = vmul.f32 %v207, %v204
    %v210 = vmul.f32 %v207, %v205
    %v211 = vmul.f32 %v207, %v206
    %v212 = vadd.f32 %v198, %v208
    %v213 = vadd.f32 %v199, %v209
    %v214 = vadd.f32 %v200, %v210
    %v215 = vadd.f32 %v201, %v211
    %v216 = vsub.f32 0.0, %v212
    %v217 = vsub.f32 0.0, %v213
    %v218 = vsub.f32 0.0, %v214
    %v219 = vsub.f32 0.0, %v215
    %v220 = vmul.f32 %v216, 1.442695
    %v221 = vpow.pop %v220
    %v222 = vmul.f32 %v217, 1.442695
    %v223 = vpow.pop %v222
    %v224 = vmul.f32 %v218, 1.442695
    %v225 = vpow.pop %v224
    %v226 = vmul.f32 %v219, 1.442695
    %v227 = vpow.pop %v226
    %v228 = vadd.f32 %v221, 1.0
    %v229 = vadd.f32 %v223, 1.0
    %v230 = vadd.f32 %v225, 1.0
    %v231 = vadd.f32 %v227, 1.0
    %v232 = vrcp.pop %v228
    %v233 = vmul.f32 %v228, %v232
    %v234 = vsub.f32 1.0, %v233
    %v235 = vmul.f32 %v232, %v234
    %v236 = vadd.f32 %v232, %v235
    %vm237 = vweird.f32 %v228
    %vm238 = vweird.f32 %v232
    %vm239 = vmor %vm237, %vm238
    %v240 = vsel %vm239, %v232, %v236
    %v241 = vand.u32 2147483647, %v228
    %vm242 = vcmp.eq.f32.partialorder %v241, 8.507059e+37
    %v243 = vand.u32 %v228, 2147483648
    %v244 = vor.u32 1.1754944e-38, %v243
    %v245 = vsel %vm242, %v244, %v240
    %v246 = vmul.f32 1.0, %v245
    %v247 = vrcp.pop %v229
    %v248 = vmul.f32 %v229, %v247
    %v249 = vsub.f32 1.0, %v248
    %v250 = vmul.f32 %v247, %v249
    %v251 = vadd.f32 %v247, %v250
    %vm252 = vweird.f32 %v229
    %vm253 = vweird.f32 %v247
    %vm254 = vmor %vm252, %vm253
    %v255 = vsel %vm254, %v247, %v251
    %v256 = vand.u32 2147483647, %v229
    %vm257 = vcmp.eq.f32.partialorder %v256, 8.507059e+37
    %v258 = vand.u32 %v229, 2147483648
    %v259 = vor.u32 1.1754944e-38, %v258
    %v260 = vsel %vm257, %v259, %v255
    %v261 = vmul.f32 1.0, %v260
    %v262 = vrcp.pop %v230
    %v263 = vmul.f32 %v230, %v262
    %v264 = vsub.f32 1.0, %v263
    %v265 = vmul.f32 %v262, %v264
    %v266 = vadd.f32 %v262, %v265
    %vm267 = vweird.f32 %v230
    %vm268 = vweird.f32 %v262
    %vm269 = vmor %vm267, %vm268
    %v270 = vsel %vm269, %v262, %v266
    %v271 = vand.u32 2147483647, %v230
    %vm272 = vcmp.eq.f32.partialorder %v271, 8.507059e+37
    %v273 = vand.u32 %v230, 2147483648
    %v274 = vor.u32 1.1754944e-38, %v273
    %v275 = vsel %vm272, %v274, %v270
    %v276 = vmul.f32 1.0, %v275
    %v277 = vrcp.pop %v231
    %v278 = vmul.f32 %v231, %v277
    %v279 = vsub.f32 1.0, %v278
    %v280 = vmul.f32 %v277, %v279
    %v281 = vadd.f32 %v277, %v280
    %vm282 = vweird.f32 %v231
    %vm283 = vweird.f32 %v277
    %vm284 = vmor %vm282, %vm283
    %v285 = vsel %vm284, %v277, %v281
    %v286 = vand.u32 2147483647, %v231
    %vm287 = vcmp.eq.f32.partialorder %v286, 8.507059e+37
    %v288 = vand.u32 %v231, 2147483648
    %v289 = vor.u32 1.1754944e-38, %v288
    %v290 = vsel %vm287, %v289, %v285
    %v291 = vmul.f32 1.0, %v290
    %v292 = vmul.f32 %v212, %v246
    %v293 = vmul.f32 %v213, %v261
    %v294 = vmul.f32 %v214, %v276
    %v295 = vmul.f32 %v215, %v291
    %296 = vst [vmem:[#allocation2] sm:$0x1] 0.0
    %297 = vst [vmem:[#allocation2 + $0x18] sm:$0x1] 0.0
    %298 = vst [vmem:[#allocation2 + $0x11] sm:$0x1] 0.0
    %299 = vst [vmem:[#allocation2 + $0x29] sm:$0x1] 0.0
    %300 = vst [vmem:[#allocation2 + $0x1] sm:$0xff] %v292
    %301 = vst [vmem:[#allocation2 + $0x9] sm:$0xff] %v293
    %302 = vst [vmem:[#allocation2 + $0x19] sm:$0xff] %v294
    %303 = vst [vmem:[#allocation2 + $0x21] sm:$0xff] %v295
    %v304 = vld [vmem:[#allocation2] sm:$0xff]
    %v305 = vld [vmem:[#allocation2 + $0x8] sm:$0xff]
    %v306 = vld [vmem:[#allocation2 + $0x18] sm:$0xff]
    %v307 = vld [vmem:[#allocation2 + $0x20] sm:$0xff]
    %v308 = vld [vmem:[#allocation2 + $0x1] sm:$0xff]
    %v309 = vld [vmem:[#allocation2 + $0x9] sm:$0xff]
    %v310 = vld [vmem:[#allocation2 + $0x19] sm:$0xff]
    %v311 = vld [vmem:[#allocation2 + $0x21] sm:$0xff]
    %v312 = vld [vmem:[#allocation2 + $0x2] sm:$0xff]
    %v313 = vld [vmem:[#allocation2 + $0xa] sm:$0xff]
    %v314 = vld [vmem:[#allocation2 + $0x1a] sm:$0xff]
    %v315 = vld [vmem:[#allocation2 + $0x22] sm:$0xff]
    %v316 = vld [vmem:[#allocation13] sm:$0xff]
    %v317 = vld [vmem:[#allocation13 + $0x8] sm:$0xff]
    %v318 = vld [vmem:[#allocation13 + $0x10] sm:$0xff]
    %v319 = vld [vmem:[#allocation13 + $0x18] sm:$0xff]
    %v320 = vld [vmem:[#allocation13 + $0x20] sm:$0xff]
    %v321 = vld [vmem:[#allocation13 + $0x28] sm:$0xff]
    %v322 = vld [vmem:[#allocation13 + $0x30] sm:$0xff]
    %v323 = vld [vmem:[#allocation13 + $0x38] sm:$0xff]
    %v324 = vld [vmem:[#allocation13 + $0x40] sm:$0xff]
    %v325 = vld [vmem:[#allocation13 + $0x48] sm:$0xff]
    %v326 = vld [vmem:[#allocation13 + $0x50] sm:$0xff]
    %v327 = vld [vmem:[#allocation13 + $0x58] sm:$0xff]
    %v328 = vld [vmem:[#allocation13 + $0x60] sm:$0xff]
    %v329 = vld [vmem:[#allocation13 + $0x68] sm:$0xff]
    %v330 = vld [vmem:[#allocation13 + $0x70] sm:$0xff]
    %v331 = vld [vmem:[#allocation13 + $0x78] sm:$0xff]
    %v332 = vld [vmem:[#allocation13 + $0x80] sm:$0xff]
    %v333 = vld [vmem:[#allocation13 + $0x88] sm:$0xff]
    %v334 = vld [vmem:[#allocation13 + $0x90] sm:$0xff]
    %v335 = vld [vmem:[#allocation13 + $0x98] sm:$0xff]
    %v336 = vld [vmem:[#allocation13 + $0xa0] sm:$0xff]
    %v337 = vld [vmem:[#allocation13 + $0xa8] sm:$0xff]
    %v338 = vld [vmem:[#allocation13 + $0xb0] sm:$0xff]
    %v339 = vld [vmem:[#allocation13 + $0xb8] sm:$0xff]
    %v340 = vld [vmem:[#allocation13 + $0xc0] sm:$0xff]
    %v341 = vld [vmem:[#allocation13 + $0xc8] sm:$0xff]
    %v342 = vld [vmem:[#allocation13 + $0xd0] sm:$0xff]
    %v343 = vld [vmem:[#allocation13 + $0xd8] sm:$0xff]
    %v344 = vld [vmem:[#allocation13 + $0xe0] sm:$0xff]
    %v345 = vld [vmem:[#allocation13 + $0xe8] sm:$0xff]
    %v346 = vld [vmem:[#allocation13 + $0xf0] sm:$0xff]
    %v347 = vld [vmem:[#allocation13 + $0xf8] sm:$0xff]
    %v348 = vld [vmem:[#allocation13 + $0x100] sm:$0xff]
    %v349 = vld [vmem:[#allocation13 + $0x108] sm:$0xff]
    %v350 = vld [vmem:[#allocation13 + $0x110] sm:$0xff]
    %v351 = vld [vmem:[#allocation13 + $0x118] sm:$0xff]
    %v352 = vld [vmem:[#allocation13 + $0x120] sm:$0xff]
    %v353 = vld [vmem:[#allocation13 + $0x128] sm:$0xff]
    %v354 = vld [vmem:[#allocation13 + $0x130] sm:$0xff]
    %v355 = vld [vmem:[#allocation13 + $0x138] sm:$0xff]
    %v356 = vld [vmem:[#allocation13 + $0x140] sm:$0xff]
    %v357 = vld [vmem:[#allocation13 + $0x148] sm:$0xff]
    %v358 = vld [vmem:[#allocation13 + $0x150] sm:$0xff]
    %v359 = vld [vmem:[#allocation13 + $0x158] sm:$0xff]
    %v360 = vld [vmem:[#allocation13 + $0x160] sm:$0xff]
    %v361 = vld [vmem:[#allocation13 + $0x168] sm:$0xff]
    %v362 = vld [vmem:[#allocation13 + $0x170] sm:$0xff]
    %v363 = vld [vmem:[#allocation13 + $0x178] sm:$0xff]
    %364 = vmatpush.msra.mxu0 %v331
    %365 = vmatpush.msra.mxu0 %v330
    %366 = vmatpush.msra.mxu0 %v329
    %367 = vmatpush.msra.mxu0 %v328
    %368 = vmatpush.msra.mxu0 %v327
    %369 = vmatpush.msra.mxu0 %v326
    %370 = vmatpush.msra.mxu0 %v325
    %371 = vmatpush.msra.mxu0 %v324
    %372 = vmatpush.msra.mxu0 %v323
    %373 = vmatpush.msra.mxu0 %v322
    %374 = vmatpush.msra.mxu0 %v321
    %375 = vmatpush.msra.mxu0 %v320
    %376 = vmatpush.msra.mxu0 %v319
    %377 = vmatpush.msra.mxu0 %v318
    %378 = vmatpush.msra.mxu0 %v317
    %379 = vmatpush.msra.mxu0 %v316
    %380 = vmatmul.f32.gmra.mxu0 %v304
    %v381 = vpop.f32.mrf.mxu0
    %v382 = vadd.f32 0.0, %v381
    %383 = vmatmul.f32.gmra.mxu0 %v305
    %v384 = vpop.f32.mrf.mxu0
    %v385 = vadd.f32 0.0, %v384
    %386 = vmatmul.f32.gmra.mxu0 %v306
    %v387 = vpop.f32.mrf.mxu0
    %v388 = vadd.f32 0.0, %v387
    %389 = vmatmul.f32.gmra.mxu0 %v307
    %v390 = vpop.f32.mrf.mxu0
    %v391 = vadd.f32 0.0, %v390
    %392 = vdwg.mxu0
    %393 = vmatpush.msra.mxu0 %v347
    %394 = vmatpush.msra.mxu0 %v346
    %395 = vmatpush.msra.mxu0 %v345
    %396 = vmatpush.msra.mxu0 %v344
    %397 = vmatpush.msra.mxu0 %v343
    %398 = vmatpush.msra.mxu0 %v342
    %399 = vmatpush.msra.mxu0 %v341
    %400 = vmatpush.msra.mxu0 %v340
    %401 = vmatpush.msra.mxu0 %v339
    %402 = vmatpush.msra.mxu0 %v338
    %403 = vmatpush.msra.mxu0 %v337
    %404 = vmatpush.msra.mxu0 %v336
    %405 = vmatpush.msra.mxu0 %v335
    %406 = vmatpush.msra.mxu0 %v334
    %407 = vmatpush.msra.mxu0 %v333
    %408 = vmatpush.msra.mxu0 %v332
    %409 = vmatmul.f32.gmra.mxu0 %v308
    %v410 = vpop.f32.mrf.mxu0
    %v411 = vadd.f32 %v382, %v410
    %412 = vmatmul.f32.gmra.mxu0 %v309
    %v413 = vpop.f32.mrf.mxu0
    %v414 = vadd.f32 %v385, %v413
    %415 = vmatmul.f32.gmra.mxu0 %v310
    %v416 = vpop.f32.mrf.mxu0
    %v417 = vadd.f32 %v388, %v416
    %418 = vmatmul.f32.gmra.mxu0 %v311
    %v419 = vpop.f32.mrf.mxu0
    %v420 = vadd.f32 %v391, %v419
    %421 = vdwg.mxu0
    %422 = vmatpush.msra.mxu0 %v363
    %423 = vmatpush.msra.mxu0 %v362
    %424 = vmatpush.msra.mxu0 %v361
    %425 = vmatpush.msra.mxu0 %v360
    %426 = vmatpush.msra.mxu0 %v359
    %427 = vmatpush.msra.mxu0 %v358
    %428 = vmatpush.msra.mxu0 %v357
    %429 = vmatpush.msra.mxu0 %v356
    %430 = vmatpush.msra.mxu0 %v355
    %431 = vmatpush.msra.mxu0 %v354
    %432 = vmatpush.msra.mxu0 %v353
    %433 = vmatpush.msra.mxu0 %v352
    %434 = vmatpush.msra.mxu0 %v351
    %435 = vmatpush.msra.mxu0 %v350
    %436 = vmatpush.msra.mxu0 %v349
    %437 = vmatpush.msra.mxu0 %v348
    %438 = vmatmul.f32.gmra.mxu0 %v312
    %v439 = vpop.f32.mrf.mxu0
    %v440 = vadd.f32 %v411, %v439
    %441 = vmatmul.f32.gmra.mxu0 %v313
    %v442 = vpop.f32.mrf.mxu0
    %v443 = vadd.f32 %v414, %v442
    %444 = vmatmul.f32.gmra.mxu0 %v314
    %v445 = vpop.f32.mrf.mxu0
    %v446 = vadd.f32 %v417, %v445
    %447 = vmatmul.f32.gmra.mxu0 %v315
    %v448 = vpop.f32.mrf.mxu0
    %v449 = vadd.f32 %v420, %v448
    %450 = vdwg.mxu0
    %v451 = vld [vmem:[%s7] sm:$0x1]
    %v453 = vperm.slane %v451, 0
    %v455 = vmul.f32 %v440, %v453
    %v456 = vmul.f32 %v443, %v453
    %v457 = vmul.f32 %v446, %v453
    %v458 = vmul.f32 %v449, %v453
    %v459 = vld [vmem:[%s8] sm:$0x1]
    %v461 = vperm.slane %v459, 0
    %v463 = vadd.f32 %v455, %v461
    %v464 = vadd.f32 %v456, %v461
    %v465 = vadd.f32 %v457, %v461
    %v466 = vadd.f32 %v458, %v461
    %467 = vst [vmem:[#allocation14] sm:$0xff] %v463
    %468 = vst [vmem:[#allocation14 + $0x8] sm:$0xff] %v464
    %469 = vst [vmem:[#allocation14 + $0x10] sm:$0xff] %v465
    %470 = vst [vmem:[#allocation14 + $0x18] sm:$0xff] %v466
    // Predicated region
    $region62: #{tpu_custom_call.1} parent=1 // pred_check
      _
    $region63: #{tpu_custom_call.1} parent=1 // pred_check_branch
      %472 = sbr.rel (0) target = $region65
    $region64: #{tpu_custom_call.1} parent=1 // pred_region
      %474 = vsyncadd [#allocation5], 0
      %s475 = sshll.u32 [#allocation14], 4
      %s476 = int_to_ptr.vmem [resolvable:$true] %s475
      %s477 = sshll.u32 %s9, 4
      %s478 = int_to_ptr.hbm [resolvable:$true] %s477
      %483 = dma.vmem_to_hbm [thread:$0]  %s476, 512, %s478, [#allocation5], 128, 128, 8
    $region65: #{tpu_custom_call.1} parent=1 // pred_fallthru
      _
    // Predicated region
    $region66: #{tpu_custom_call.1} parent=1 // pred_check
      _
    $region67: #{tpu_custom_call.1} parent=1 // pred_check_branch
      %485 = sbr.rel (0) target = $region69
    $region68: #{tpu_custom_call.1} parent=1 // pred_region
      %487 = dma.done [#allocation5], 512
    $region69: #{tpu_custom_call.1} parent=1 // pred_fallthru
      _
    %488 = vsyncpa [#allocation4], 1
    %489 = vsyncpa [#allocation9], 1
    %490 = vsyncpa [#allocation12], 1
    %491 = vsyncpa [#allocation5], 1
    %492 = vsyncpa [#allocation6], 1

</llo_original>
